<compile_context>
chip_gen: v7x
topology: tpu7x:2x2x1
jax: 0.10.0
libtpu: 0.0.40
codegen_flags: <defaults>
</compile_context>

<pallas_src>
import numpy as np
import jax
import jax.numpy as jnp
from jax import lax
from jax.experimental import pallas as pl
from jax.experimental.pallas import tpu as pltpu

TOP_K = 5  # the module hard-codes torch.topk(freq, 5)


def _round_up(n, m):
    return ((n + m - 1) // m) * m


def _kth_squared(freq2):
    """Per-row 5th-largest value of freq2 (duplicates counted), shape [TB, 1]."""
    tb, fp = freq2.shape
    col = lax.broadcasted_iota(jnp.int32, (tb, fp), 1)
    work = freq2
    # Iterative first-occurrence knockout; 4 knockouts then max == 5th largest.
    # (For very long T / huge Fp a block-local top-5 then combine would cut
    #  XLU reduction width, but Fp is one-few vregs wide for TimeMixer sizes.)
    for _ in range(TOP_K - 1):
        m = jnp.max(work, axis=-1, keepdims=True)
        first = jnp.min(jnp.where(work == m, col, fp), axis=-1, keepdims=True)
        work = jnp.where(col == first, -jnp.inf, work)
    return jnp.max(work, axis=-1, keepdims=True)


def _rfft_freq2(x, w_ref, freq2_scr):
    """spec = x @ [Wr | Wi]; freq2 scratch <- |xf|^2 with batch row 0 zeroed on
    the first grid tile (matches `freq[0] = 0`).  Returns (spec, freq2)."""
    fp = freq2_scr.shape[-1]
    spec = jnp.dot(x.astype(w_ref.dtype), w_ref[...],
                   preferred_element_type=jnp.float32)        # [TB, 2*Fp]
    xr = spec[:, :fp]
    xi = spec[:, fp:]
    freq2_scr[...] = xr * xr + xi * xi

    @pl.when(pl.program_id(0) == 0)
    def _():
        # `freq[0] = 0` zeroes *batch row 0* (faithful to the PyTorch code,
        # which indexes the first axis).
        freq2_scr[0:1, :] = jnp.zeros((1, fp), freq2_scr.dtype)

    return spec, freq2_scr[...]


def _kth_kernel(x_ref, w_ref, kth_ref, freq2_scr):
    """Pass 1: per-row 5th-largest squared magnitude."""
    _, freq2 = _rfft_freq2(x_ref[...], w_ref, freq2_scr)
    kth_ref[...] = _kth_squared(freq2)


def _decomp_kernel(thr_ref, x_ref, w_ref, a_ref, season_ref, trend_ref,
                   freq2_scr):
    """Pass 2: mask spectrum against the global threshold, irfft, residual."""
    fp = freq2_scr.shape[-1]
    x = x_ref[...]
    # Recompute the spectrum: same op / shapes / data as pass 1 -> bitwise
    # identical, so the element that defines the threshold compares equal and
    # is dropped exactly like `xf[freq <= thr] = 0` in torch.
    spec, freq2 = _rfft_freq2(x, w_ref, freq2_scr)
    thr2 = thr_ref[0, 0]                      # global threshold (squared mag)
    keep = freq2 > thr2
    xr_m = jnp.where(keep, spec[:, :fp], 0.0)
    xi_m = jnp.where(keep, spec[:, fp:], 0.0)
    spec_m = jnp.concatenate([xr_m, xi_m], axis=-1)
    season = jnp.dot(spec_m.astype(a_ref.dtype), a_ref[...],
                     preferred_element_type=jnp.float32)
    season_ref[...] = season.astype(season_ref.dtype)
    trend_ref[...] = (x - season).astype(trend_ref.dtype)


def _build_fused_dft_matrices(T, Fp, dtype):
    """Fused, zero-padded DFT matrices: W=[Wr|Wi] ([T,2Fp]), A=[Ar;Ai] ([2Fp,T])."""
    F = T // 2 + 1
    Wc = np.fft.rfft(np.eye(T, dtype=np.float64), axis=-1)        # [T, F]
    W = np.zeros((T, 2 * Fp), np.float64)
    W[:, :F] = Wc.real
    W[:, Fp:Fp + F] = Wc.imag
    eye_f = np.eye(F, dtype=np.complex128)
    A = np.zeros((2 * Fp, T), np.float64)
    A[:F] = np.fft.irfft(eye_f, n=T, axis=-1)                     # [F, T]
    A[Fp:Fp + F] = np.fft.irfft(1j * eye_f, n=T, axis=-1)         # [F, T]
    return jnp.asarray(W, dtype=dtype), jnp.asarray(A, dtype=dtype)


def dft_series_decomp(x, *, tile_b=128, matmul_dtype=jnp.float32):
    """x: [B, T] float32, T even.  Returns (x_season, x_trend), both [B, T] f32.

    matmul_dtype=jnp.bfloat16 halves the resident-matrix VMEM footprint and
    runs the MXU at native bf16 rate (biggest win on v6e/v7x), at reduced
    precision (re-validate tolerances before enabling).
    """
    x = x.astype(jnp.float32)
    B, T = x.shape
    assert T % 2 == 0, "torch.fft.irfft default output length requires even T"
    F = T // 2 + 1
    assert F > TOP_K, "need more than 5 rfft bins for torch.topk(freq, 5)"
    Fp = _round_up(F, 128)                       # lane-dense spectrum width

    TB = min(_round_up(tile_b, 8), _round_up(B, 8))
    B_pad = _round_up(B, TB)
    nb = B_pad // TB
    # Pad batch by replicating the last row: duplicate rows cannot change the
    # global min-of-kth threshold, and padded output rows are sliced off.
    x_p = x if B_pad == B else jnp.pad(x, ((0, B_pad - B), (0, 0)), mode="edge")

    # TODO(synk): for very large T (>~2048) the resident [T,2Fp]/[2Fp,T]
    # matrices outgrow v7x's 64 MiB VMEM even in bf16; add a K/F grid axis to
    # tile the contractions instead of keeping the matrices fully resident.
    W, A = _build_fused_dft_matrices(T, Fp, matmul_dtype)

    md_bytes = jnp.dtype(matmul_dtype).itemsize
    vmem_bytes = (2 * (4 * Fp * T) * md_bytes      # W + A resident (+ slack)
                  + 2 * 3 * TB * T * 4             # double-buffered x/season/trend
                  + 3 * TB * Fp * 4                # freq2 scratch + spectrum temps
                  + (8 << 20))                     # headroom
    vmem_bytes = int(min(max(vmem_bytes, 32 << 20), 60 << 20))
    cparams = pltpu.CompilerParams(dimension_semantics=("parallel",),
                                   vmem_limit_bytes=vmem_bytes)

    x_spec = pl.BlockSpec((TB, T), lambda i: (i, 0))
    w_spec = pl.BlockSpec((T, 2 * Fp), lambda i: (0, 0))    # VMEM-resident
    a_spec = pl.BlockSpec((2 * Fp, T), lambda i: (0, 0))    # VMEM-resident

    # Pass 1: per-row 5th-largest squared magnitude.
    kth2 = pl.pallas_call(
        _kth_kernel,
        out_shape=jax.ShapeDtypeStruct((B_pad, 1), jnp.float32),
        grid=(nb,),
        in_specs=[x_spec, w_spec],
        out_specs=pl.BlockSpec((TB, 1), lambda i: (i, 0)),
        scratch_shapes=[pltpu.VMEM((TB, Fp), jnp.float32)],
        compiler_params=cparams,
    )(x_p, W)

    # Global threshold = min over ALL batch rows of the per-row 5th-largest
    # (squared) magnitude - must be computed before any masking (global reduce).
    thr2 = jnp.min(kth2).reshape(1, 1).astype(jnp.float32)

    # Pass 2: mask against the global threshold, fused irfft, residual.
    season_p, trend_p = pl.pallas_call(
        _decomp_kernel,
        out_shape=(jax.ShapeDtypeStruct((B_pad, T), jnp.float32),
                   jax.ShapeDtypeStruct((B_pad, T), jnp.float32)),
        grid=(nb,),
        in_specs=[pl.BlockSpec(memory_space=pltpu.MemorySpace.SMEM),  # thr2
                  x_spec, w_spec, a_spec],
        out_specs=(pl.BlockSpec((TB, T), lambda i: (i, 0)),
                   pl.BlockSpec((TB, T), lambda i: (i, 0))),
        scratch_shapes=[pltpu.VMEM((TB, Fp), jnp.float32)],
        compiler_params=cparams,
    )(thr2, x_p, W, A)

    return season_p[:B], trend_p[:B]


def _reference_numpy(x):
    """Pure numpy re-implementation of the PyTorch forward, for checking."""
    x = np.asarray(x, dtype=np.float64)
    xf = np.fft.rfft(x, axis=-1)
    freq = np.abs(xf)
    freq[0] = 0
    top_k_freq = np.sort(freq, axis=-1)[..., ::-1][..., :TOP_K]
    thr = top_k_freq.min()
    xf = np.where(freq <= thr, 0.0 + 0.0j, xf)
    season = np.fft.irfft(xf, axis=-1)
    trend = x - season
    return season.astype(np.float32), trend.astype(np.float32)


if __name__ == "__main__":
    key = jax.random.PRNGKey(0)
    B, T = 8, 16
    x = jax.random.normal(key, (B, T), dtype=jnp.float32)

    season, trend = dft_series_decomp(x)
    jax.block_until_ready(season)
    jax.block_until_ready(trend)

    season_ref, trend_ref = _reference_numpy(np.asarray(x))
    np.testing.assert_allclose(np.asarray(season), season_ref,
                               rtol=1e-4, atol=2e-4)
    np.testing.assert_allclose(np.asarray(trend), trend_ref,
                               rtol=1e-4, atol=2e-4)
    print("KERNEL_OK")
</pallas_src>

<mosaic_0001>
module attributes {stable_mosaic.version = 11 : i64} {
  func.func @_kth_kernel(%arg0: i32, %arg1: memref<8x16xf32, #tpu.memory_space<vmem>>, %arg2: memref<16x256xf32, #tpu.memory_space<vmem>>, %arg3: memref<8x1xf32, #tpu.memory_space<vmem>>, %arg4: memref<8x128xf32, #tpu.memory_space<vmem>>) attributes {dimension_semantics = [#tpu.dimension_semantics<parallel>], iteration_bounds = array<i64: 1>, scalar_prefetch = 0 : i64, scratch_operands = 1 : i64, tpu.core_type = #tpu.core_type<tc>, window_params = [{transform_indices = @transform_0, window_bounds = array<i64: 8, 16>}, {pipeline_mode = #tpu.pipeline_mode<synchronous>, transform_indices = @transform_1, window_bounds = array<i64: 16, 256>}, {transform_indices = @transform_2, window_bounds = array<i64: 8, 1>}]} {
    %c0 = arith.constant 0 : index
    %c0_0 = arith.constant 0 : index
    %0 = vector.load %arg1[%c0, %c0_0] : memref<8x16xf32, #tpu.memory_space<vmem>>, vector<8x16xf32>
    %c0_1 = arith.constant 0 : index
    %c0_2 = arith.constant 0 : index
    %1 = vector.load %arg2[%c0_1, %c0_2] : memref<16x256xf32, #tpu.memory_space<vmem>>, vector<16x256xf32>
    %cst = arith.constant dense<0.000000e+00> : vector<8x256xf32>
    %2 = tpu.matmul %0, %1, %cst {dimension_numbers = #tpu.dot_dimension_numbers<[1], [0], [0], [1], [0, 0, 1, 1], [], []>} : vector<8x16xf32>, vector<16x256xf32>, vector<8x256xf32> -> vector<8x256xf32>
    %3 = vector.extract_strided_slice %2 {offsets = [0, 0], sizes = [8, 128], strides = [1, 1]} : vector<8x256xf32> to vector<8x128xf32>
    %4 = vector.extract_strided_slice %2 {offsets = [0, 128], sizes = [8, 128], strides = [1, 1]} : vector<8x256xf32> to vector<8x128xf32>
    %5 = arith.mulf %3, %3 : vector<8x128xf32>
    %6 = arith.mulf %4, %4 : vector<8x128xf32>
    %7 = arith.addf %5, %6 : vector<8x128xf32>
    %c0_3 = arith.constant 0 : index
    %c0_4 = arith.constant 0 : index
    %8 = vector.load %arg4[%c0_3, %c0_4] : memref<8x128xf32, #tpu.memory_space<vmem>>, vector<8x128xf32>
    tpu.vector_store %arg4[%c0_3, %c0_4], %7 {strides = array<i32>} : memref<8x128xf32, #tpu.memory_space<vmem>>, vector<8x128xf32>,
    %c0_i32 = arith.constant 0 : i32
    %9 = arith.cmpi eq, %arg0, %c0_i32 : i32
    %10 = arith.extui %9 : i1 to i32
    %c0_i32_5 = arith.constant 0 : i32
    %11 = arith.cmpi ne, %10, %c0_i32_5 : i32
    scf.if %11 {
      %cst_26 = arith.constant 0.000000e+00 : f32
      %65 = vector.broadcast %cst_26 : f32 to vector<1x128xf32>
      %c0_27 = arith.constant 0 : index
      %c0_28 = arith.constant 0 : index
      %66 = vector.load %arg4[%c0_27, %c0_28] : memref<8x128xf32, #tpu.memory_space<vmem>>, vector<1x128xf32>
      tpu.vector_store %arg4[%c0_27, %c0_28], %65 {strides = array<i32>} : memref<8x128xf32, #tpu.memory_space<vmem>>, vector<1x128xf32>,
    } else {
    }
    %c0_6 = arith.constant 0 : index
    %c0_7 = arith.constant 0 : index
    %12 = vector.load %arg4[%c0_6, %c0_7] : memref<8x128xf32, #tpu.memory_space<vmem>>, vector<8x128xf32>
    %13 = tpu.iota {dimensions = array<i32: 1>} : vector<8x128xi32>
    %cst_8 = arith.constant dense<0xFF800000> : vector<8xf32>
    %14 = vector.multi_reduction <maximumf>, %12, %cst_8 [1] : vector<8x128xf32> to vector<8xf32>
    %15 = vector.shape_cast %14 : vector<8xf32> to vector<8x1xf32>
    %16 = vector.broadcast %15 : vector<8x1xf32> to vector<8x128xf32>
    %17 = arith.cmpf oeq, %12, %16 : vector<8x128xf32>
    %c128_i32 = arith.constant 128 : i32
    %18 = vector.broadcast %c128_i32 : i32 to vector<8x128xi32>
    %19 = arith.select %17, %13, %18 : vector<8x128xi1>, vector<8x128xi32>
    %cst_9 = arith.constant dense<2147483647> : vector<8xi32>
    %20 = vector.multi_reduction <minsi>, %19, %cst_9 [1] : vector<8x128xi32> to vector<8xi32>
    %21 = vector.shape_cast %20 : vector<8xi32> to vector<8x1xi32>
    %22 = vector.broadcast %21 : vector<8x1xi32> to vector<8x128xi32>
    %23 = arith.cmpi eq, %13, %22 : vector<8x128xi32>
    %cst_10 = arith.constant 0xFF800000 : f32
    %24 = vector.broadcast %cst_10 : f32 to vector<8x128xf32>
    %25 = arith.select %23, %24, %12 : vector<8x128xi1>, vector<8x128xf32>
    %cst_11 = arith.constant dense<0xFF800000> : vector<8xf32>
    %26 = vector.multi_reduction <maximumf>, %25, %cst_11 [1] : vector<8x128xf32> to vector<8xf32>
    %27 = vector.shape_cast %26 : vector<8xf32> to vector<8x1xf32>
    %28 = vector.broadcast %27 : vector<8x1xf32> to vector<8x128xf32>
    %29 = arith.cmpf oeq, %25, %28 : vector<8x128xf32>
    %c128_i32_12 = arith.constant 128 : i32
    %30 = vector.broadcast %c128_i32_12 : i32 to vector<8x128xi32>
    %31 = arith.select %29, %13, %30 : vector<8x128xi1>, vector<8x128xi32>
    %cst_13 = arith.constant dense<2147483647> : vector<8xi32>
    %32 = vector.multi_reduction <minsi>, %31, %cst_13 [1] : vector<8x128xi32> to vector<8xi32>
    %33 = vector.shape_cast %32 : vector<8xi32> to vector<8x1xi32>
    %34 = vector.broadcast %33 : vector<8x1xi32> to vector<8x128xi32>
    %35 = arith.cmpi eq, %13, %34 : vector<8x128xi32>
    %cst_14 = arith.constant 0xFF800000 : f32
    %36 = vector.broadcast %cst_14 : f32 to vector<8x128xf32>
    %37 = arith.select %35, %36, %25 : vector<8x128xi1>, vector<8x128xf32>
    %cst_15 = arith.constant dense<0xFF800000> : vector<8xf32>
    %38 = vector.multi_reduction <maximumf>, %37, %cst_15 [1] : vector<8x128xf32> to vector<8xf32>
    %39 = vector.shape_cast %38 : vector<8xf32> to vector<8x1xf32>
    %40 = vector.broadcast %39 : vector<8x1xf32> to vector<8x128xf32>
    %41 = arith.cmpf oeq, %37, %40 : vector<8x128xf32>
    %c128_i32_16 = arith.constant 128 : i32
    %42 = vector.broadcast %c128_i32_16 : i32 to vector<8x128xi32>
    %43 = arith.select %41, %13, %42 : vector<8x128xi1>, vector<8x128xi32>
    %cst_17 = arith.constant dense<2147483647> : vector<8xi32>
    %44 = vector.multi_reduction <minsi>, %43, %cst_17 [1] : vector<8x128xi32> to vector<8xi32>
    %45 = vector.shape_cast %44 : vector<8xi32> to vector<8x1xi32>
    %46 = vector.broadcast %45 : vector<8x1xi32> to vector<8x128xi32>
    %47 = arith.cmpi eq, %13, %46 : vector<8x128xi32>
    %cst_18 = arith.constant 0xFF800000 : f32
    %48 = vector.broadcast %cst_18 : f32 to vector<8x128xf32>
    %49 = arith.select %47, %48, %37 : vector<8x128xi1>, vector<8x128xf32>
    %cst_19 = arith.constant dense<0xFF800000> : vector<8xf32>
    %50 = vector.multi_reduction <maximumf>, %49, %cst_19 [1] : vector<8x128xf32> to vector<8xf32>
    %51 = vector.shape_cast %50 : vector<8xf32> to vector<8x1xf32>
    %52 = vector.broadcast %51 : vector<8x1xf32> to vector<8x128xf32>
    %53 = arith.cmpf oeq, %49, %52 : vector<8x128xf32>
    %c128_i32_20 = arith.constant 128 : i32
    %54 = vector.broadcast %c128_i32_20 : i32 to vector<8x128xi32>
    %55 = arith.select %53, %13, %54 : vector<8x128xi1>, vector<8x128xi32>
    %cst_21 = arith.constant dense<2147483647> : vector<8xi32>
    %56 = vector.multi_reduction <minsi>, %55, %cst_21 [1] : vector<8x128xi32> to vector<8xi32>
    %57 = vector.shape_cast %56 : vector<8xi32> to vector<8x1xi32>
    %58 = vector.broadcast %57 : vector<8x1xi32> to vector<8x128xi32>
    %59 = arith.cmpi eq, %13, %58 : vector<8x128xi32>
    %cst_22 = arith.constant 0xFF800000 : f32
    %60 = vector.broadcast %cst_22 : f32 to vector<8x128xf32>
    %61 = arith.select %59, %60, %49 : vector<8x128xi1>, vector<8x128xf32>
    %cst_23 = arith.constant dense<0xFF800000> : vector<8xf32>
    %62 = vector.multi_reduction <maximumf>, %61, %cst_23 [1] : vector<8x128xf32> to vector<8xf32>
    %63 = vector.shape_cast %62 : vector<8xf32> to vector<8x1xf32>
    %c0_24 = arith.constant 0 : index
    %c0_25 = arith.constant 0 : index
    %64 = vector.load %arg3[%c0_24, %c0_25] : memref<8x1xf32, #tpu.memory_space<vmem>>, vector<8x1xf32>
    tpu.vector_store %arg3[%c0_24, %c0_25], %63 {strides = array<i32>} : memref<8x1xf32, #tpu.memory_space<vmem>>, vector<8x1xf32>,
    return
  }
  func.func @transform_0(%arg0: i32) -> (i32, i32) {
    %c0_i32 = arith.constant 0 : i32
    %c0_i32_0 = arith.constant 0 : i32
    return %arg0, %c0_i32 : i32, i32
  }
  func.func @transform_1(%arg0: i32) -> (i32, i32) {
    %c0_i32 = arith.constant 0 : i32
    %c0_i32_0 = arith.constant 0 : i32
    %c0_i32_1 = arith.constant 0 : i32
    return %c0_i32, %c0_i32_0 : i32, i32
  }
  func.func @transform_2(%arg0: i32) -> (i32, i32) {
    %c0_i32 = arith.constant 0 : i32
    %c0_i32_0 = arith.constant 0 : i32
    return %arg0, %c0_i32 : i32, i32
  }
}

</mosaic_0001>

<llo_original>
// kernel: tpu_custom_call.1
$region0: #{tpu_custom_call.1}
  #allocation0 [shape = 'u32[]', space=smem, size = 0x4, offset = 0x4, fixed_abs, tag = 'smem constant byte address 0x4 - core index']
  #allocation1 [shape = 'u32[144,128]{1,0:T(1,128)}', space=vmem, size = 0x12000, scoped, tag = 'internal scratch']
  #allocation2 [shape = 'f32[8,128]{1,0:T(8,128)}', space=vmem, size = 0x1000, scoped, tag = 'scratch operand']
  %s0 = inlined_call_operand.hbm [shape: f32[8,16], index: 0, kind: input, shape index: {}]
  %s1 = inlined_call_operand.hbm [shape: f32[16,256], index: 1, kind: input, shape index: {}]
  %s2 = inlined_call_operand.vmem [shape: f32[8,1], index: 2, kind: output, shape index: {}]
  %s3 = sld [smem:[#allocation0]]
  $region30: #{tpu_custom_call.1} parent=0
    _
  %s5 = ssub.s32 1, %s3
  %s6 = scalar_select 0, %s5, %s3
  $region1: #{tpu_custom_call.1} parent=0
    #allocation3 [shape = 'u8[4096]{0}', space=vmem, size = 0x1000, scoped, tag = 'input window, operand 0, single buffered']
    #allocation4 [shape = 's32[1]{0}', space=sflag, size = 0x4, scoped, tag = 'scoped memory for tpu_custom_call.1']
    #allocation5 [shape = 'u8[16384]{0}', space=vmem, size = 0x4000, scoped, tag = 'input window, operand 1, single buffered']
    #allocation6 [shape = 's32[1]{0}', space=sflag, size = 0x4, scoped, tag = 'scoped memory for tpu_custom_call.1']
    %7 = vsyncpa [#allocation4], 0
    %8 = vsyncpa [#allocation6], 0
    // Predicated region
    $region2: #{tpu_custom_call.1} parent=1 // pred_check
      _
    $region3: #{tpu_custom_call.1} parent=1 // pred_check_branch
      %10 = sbr.rel (0) target = $region5
    $region4: #{tpu_custom_call.1} parent=1 // pred_region
      %s12 = ssub.s32 128, 128
      %13 = vsyncadd [#allocation4], %s12
      %s15 = sshll.u32 [#allocation3], 4
      %s16 = int_to_ptr.vmem [resolvable:$true] %s15
      %18 = dma.hbm_to_vmem [thread:$0]  %s0, 128, %s16, [#allocation4]
    $region5: #{tpu_custom_call.1} parent=1 // pred_fallthru
      _
    // Predicated region
    $region6: #{tpu_custom_call.1} parent=1 // pred_check
      _
    $region7: #{tpu_custom_call.1} parent=1 // pred_check_branch
      %20 = sbr.rel (0) target = $region9
    $region8: #{tpu_custom_call.1} parent=1 // pred_region
      %s22 = ssub.s32 512, 512
      %23 = vsyncadd [#allocation6], %s22
      %s24 = sshll.u32 [#allocation5], 4
      %s25 = int_to_ptr.vmem [resolvable:$true] %s24
      %30 = dma.hbm_to_vmem [thread:$0]  %s1, 512, %s25, [#allocation6], 256, 256, 16
    $region9: #{tpu_custom_call.1} parent=1 // pred_fallthru
      _
    // Predicated region
    $region10: #{tpu_custom_call.1} parent=1 // pred_check
      _
    $region11: #{tpu_custom_call.1} parent=1 // pred_check_branch
      %32 = sbr.rel (0) target = $region13
    $region12: #{tpu_custom_call.1} parent=1 // pred_region
      %33 = dma.done [#allocation4], 128
    $region13: #{tpu_custom_call.1} parent=1 // pred_fallthru
      _
    // Predicated region
    $region14: #{tpu_custom_call.1} parent=1 // pred_check
      _
    $region15: #{tpu_custom_call.1} parent=1 // pred_check_branch
      %35 = sbr.rel (0) target = $region17
    $region16: #{tpu_custom_call.1} parent=1 // pred_region
      %36 = dma.done [#allocation6], 512
    $region17: #{tpu_custom_call.1} parent=1 // pred_fallthru
      _
    %v37 = vld [vmem:[#allocation3] sm:$0xff]
    %v38 = vld [vmem:[#allocation5] sm:$0xff]
    %v39 = vld [vmem:[#allocation5 + $0x8] sm:$0xff]
    %v40 = vld [vmem:[#allocation5 + $0x10] sm:$0xff]
    %v41 = vld [vmem:[#allocation5 + $0x18] sm:$0xff]
    %vm42 = vcmask 130048
    %v44 = vsel %vm42, %v37, 0
    %46 = vmatprep.subr.mxu0 %v39
    %47 = vmatpush1.msra.mxu0 %v38
    %48 = vmatprep.subr.mxu0 %v41
    %49 = vmatpush1.msra.mxu0 %v40
    %50 = vmatprep.subr.mxu0 0.0
    %51 = vmatpush1.msra.mxu0 0.0
    %52 = vmatprep.subr.mxu0 0.0
    %53 = vmatpush1.msra.mxu0 0.0
    %54 = vmatprep.subr.mxu0 0.0
    %55 = vmatpush1.msra.mxu0 0.0
    %56 = vmatprep.subr.mxu0 0.0
    %57 = vmatpush1.msra.mxu0 0.0
    %58 = vmatprep.subr.mxu0 0.0
    %59 = vmatpush1.msra.mxu0 0.0
    %60 = vmatprep.subr.mxu0 0.0
    %61 = vmatpush1.msra.mxu0 0.0
    %62 = vmatprep.subr.mxu0 0.0
    %63 = vmatpush1.msra.mxu0 0.0
    %64 = vmatprep.subr.mxu0 0.0
    %65 = vmatpush1.msra.mxu0 0.0
    %66 = vmatprep.subr.mxu0 0.0
    %67 = vmatpush1.msra.mxu0 0.0
    %68 = vmatprep.subr.mxu0 0.0
    %69 = vmatpush1.msra.mxu0 0.0
    %70 = vmatprep.subr.mxu0 0.0
    %71 = vmatpush1.msra.mxu0 0.0
    %72 = vmatprep.subr.mxu0 0.0
    %73 = vmatpush1.msra.mxu0 0.0
    %74 = vmatprep.subr.mxu0 0.0
    %75 = vmatpush1.msra.mxu0 0.0
    %76 = vmatprep.subr.mxu0 0.0
    %77 = vmatpush1.msra.mxu0 0.0
    %78 = vmatprep.subr.mxu0 0.0
    %79 = vmatpush1.msra.mxu0 0.0
    %80 = vmatprep.subr.mxu0 0.0
    %81 = vmatpush1.msra.mxu0 0.0
    %82 = vmatprep.subr.mxu0 0.0
    %83 = vmatpush1.msra.mxu0 0.0
    %84 = vmatprep.subr.mxu0 0.0
    %85 = vmatpush1.msra.mxu0 0.0
    %86 = vmatprep.subr.mxu0 0.0
    %87 = vmatpush1.msra.mxu0 0.0
    %88 = vmatprep.subr.mxu0 0.0
    %89 = vmatpush1.msra.mxu0 0.0
    %90 = vmatprep.subr.mxu0 0.0
    %91 = vmatpush1.msra.mxu0 0.0
    %92 = vmatprep.subr.mxu0 0.0
    %93 = vmatpush1.msra.mxu0 0.0
    %94 = vmatprep.subr.mxu0 0.0
    %95 = vmatpush1.msra.mxu0 0.0
    %96 = vmatprep.subr.mxu0 0.0
    %97 = vmatpush1.msra.mxu0 0.0
    %98 = vmatprep.subr.mxu0 0.0
    %99 = vmatpush1.msra.mxu0 0.0
    %100 = vmatprep.subr.mxu0 0.0
    %101 = vmatpush1.msra.mxu0 0.0
    %102 = vmatprep.subr.mxu0 0.0
    %103 = vmatpush1.msra.mxu0 0.0
    %104 = vmatprep.subr.mxu0 0.0
    %105 = vmatpush1.msra.mxu0 0.0
    %106 = vmatprep.subr.mxu0 0.0
    %107 = vmatpush1.msra.mxu0 0.0
    %108 = vmatprep.subr.mxu0 0.0
    %109 = vmatpush1.msra.mxu0 0.0
    %110 = vmatprep.mubr.f32.mxu0 0.0
    %111 = vmatmul.mubr.f32.gmra.mrb[0].mxu0 %v44
    %v112 = vpop.f32.mrb[0].mxu0
    %v113 = vadd.f32 0.0, %v112
    %v114 = vpop.f32.mrb[0].mxu0
    %v115 = vadd.f32 0.0, %v114
    %116 = vdwg.mxu0
    %v117 = vmul.f32 %v113, %v113
    %v118 = vmul.f32 %v115, %v115
    %v119 = vadd.f32 %v117, %v118
    %120 = vst [vmem:[#allocation2] sm:$0xff] %v119
    %p121 = scmp.eq.s32.totalorder 0, 0
    // Predicated region
    $region18: #{tpu_custom_call.1} parent=1 // pred_check
      %p122 = pneg %p121
    $region19: #{tpu_custom_call.1} parent=1 // pred_check_branch
      %124 = sbr.rel (%p122) target = $region21
    $region20: #{tpu_custom_call.1} parent=1 // pred_region
      %125 = vst [vmem:[#allocation2] sm:$0x1] 0.0
    $region21: #{tpu_custom_call.1} parent=1 // pred_fallthru
      _
    %v126 = vld [vmem:[#allocation2] sm:$0xff]
    %v127 = vlaneseq
    %v128 = vand.u32 %v127, 127
    %129 = vmax.xlane.f32.xlu0 %v126
    %v130 = vpop.xlane.xlu0 %129
    %vm131 = vcmp.eq.f32.partialorder %v126, %v130
    %v132 = vsel %vm131, %v128, 128
    %v133 = vand.u32 %v132, 65535
    %v134 = vshra.s32 %v132, 16
    %v135 = vcvt.s32.f32 %v133
    %v136 = vcvt.s32.f32 %v134
    %137 = vmin.xlane.f32.xlu0 %v136
    %v138 = vpop.xlane.xlu0 %137
    %vm139 = vcmp.eq.f32.partialorder %v136, %v138
    %v140 = vsel %vm139, %v135, inf
    %141 = vmin.xlane.f32.xlu0 %v140
    %v142 = vpop.xlane.xlu0 %141
    %v143 = vcvt.f32.s32 %v142
    %v144 = vcvt.f32.s32 %v138
    %v145 = vshll.u32 %v144, 16
    %v146 = vadd.s32 %v145, %v143
    %vm147 = vcmp.eq.s32.totalorder %v128, %v146
    %v148 = vsel %vm147, -inf, %v126
    %149 = vmax.xlane.f32.xlu0 %v148
    %v150 = vpop.xlane.xlu0 %149
    %vm151 = vcmp.eq.f32.partialorder %v148, %v150
    %v152 = vsel %vm151, %v128, 128
    %v153 = vand.u32 %v152, 65535
    %v154 = vshra.s32 %v152, 16
    %v155 = vcvt.s32.f32 %v153
    %v156 = vcvt.s32.f32 %v154
    %157 = vmin.xlane.f32.xlu0 %v156
    %v158 = vpop.xlane.xlu0 %157
    %vm159 = vcmp.eq.f32.partialorder %v156, %v158
    %v160 = vsel %vm159, %v155, inf
    %161 = vmin.xlane.f32.xlu0 %v160
    %v162 = vpop.xlane.xlu0 %161
    %v163 = vcvt.f32.s32 %v162
    %v164 = vcvt.f32.s32 %v158
    %v165 = vshll.u32 %v164, 16
    %v166 = vadd.s32 %v165, %v163
    %vm167 = vcmp.eq.s32.totalorder %v128, %v166
    %v168 = vsel %vm167, -inf, %v148
    %169 = vmax.xlane.f32.xlu0 %v168
    %v170 = vpop.xlane.xlu0 %169
    %vm171 = vcmp.eq.f32.partialorder %v168, %v170
    %v172 = vsel %vm171, %v128, 128
    %v173 = vand.u32 %v172, 65535
    %v174 = vshra.s32 %v172, 16
    %v175 = vcvt.s32.f32 %v173
    %v176 = vcvt.s32.f32 %v174
    %177 = vmin.xlane.f32.xlu0 %v176
    %v178 = vpop.xlane.xlu0 %177
    %vm179 = vcmp.eq.f32.partialorder %v176, %v178
    %v180 = vsel %vm179, %v175, inf
    %181 = vmin.xlane.f32.xlu0 %v180
    %v182 = vpop.xlane.xlu0 %181
    %v183 = vcvt.f32.s32 %v182
    %v184 = vcvt.f32.s32 %v178
    %v185 = vshll.u32 %v184, 16
    %v186 = vadd.s32 %v185, %v183
    %vm187 = vcmp.eq.s32.totalorder %v128, %v186
    %v188 = vsel %vm187, -inf, %v168
    %189 = vmax.xlane.f32.xlu0 %v188
    %v190 = vpop.xlane.xlu0 %189
    %vm191 = vcmp.eq.f32.partialorder %v188, %v190
    %v192 = vsel %vm191, %v128, 128
    %v193 = vand.u32 %v192, 65535
    %v194 = vshra.s32 %v192, 16
    %v195 = vcvt.s32.f32 %v193
    %v196 = vcvt.s32.f32 %v194
    %197 = vmin.xlane.f32.xlu0 %v196
    %v198 = vpop.xlane.xlu0 %197
    %vm199 = vcmp.eq.f32.partialorder %v196, %v198
    %v200 = vsel %vm199, %v195, inf
    %201 = vmin.xlane.f32.xlu0 %v200
    %v202 = vpop.xlane.xlu0 %201
    %v203 = vcvt.f32.s32 %v202
    %v204 = vcvt.f32.s32 %v198
    %v205 = vshll.u32 %v204, 16
    %v206 = vadd.s32 %v205, %v203
    %vm207 = vcmp.eq.s32.totalorder %v128, %v206
    %v208 = vsel %vm207, -inf, %v188
    %209 = vmax.xlane.f32.xlu0 %v208
    %v210 = vpop.xlane.xlu0 %209
    %vm211 = vcmask 7168
    %212 = vst.msk [vmem:[%s2] sm:$0xff] %vm211, %v210
    // Predicated region
    $region22: #{tpu_custom_call.1} parent=1 // pred_check
      _
    $region23: #{tpu_custom_call.1} parent=1 // pred_check_branch
      %214 = sbr.rel (0) target = $region25
    $region24: #{tpu_custom_call.1} parent=1 // pred_region
      _
    $region25: #{tpu_custom_call.1} parent=1 // pred_fallthru
      _
    // Predicated region
    $region26: #{tpu_custom_call.1} parent=1 // pred_check
      _
    $region27: #{tpu_custom_call.1} parent=1 // pred_check_branch
      %216 = sbr.rel (0) target = $region29
    $region28: #{tpu_custom_call.1} parent=1 // pred_region
      _
    $region29: #{tpu_custom_call.1} parent=1 // pred_fallthru
      _
    %217 = vsyncpa [#allocation4], 1
    %218 = vsyncpa [#allocation6], 1

</llo_original>
